<compile_context>
chip_gen: v7x
topology: tpu7x:2x2x1
jax: 0.10.0
libtpu: 0.0.40
codegen_flags: <defaults>
</compile_context>

<pallas_src>
import functools

import jax
import jax.numpy as jnp
from jax.experimental import pallas as pl
from jax.experimental.pallas import tpu as pltpu


def _channel_attention_kernel(x_ref, w1_ref, w2_ref, o_ref, sum_acc, max_acc, *,
                              hw, t_hw, n_hw, lane_acc, ragged, c_tile):
    # x_ref : (TB, C, t_hw)   w1_ref : (C, Ch)   w2_ref : (Ch, C)
    # o_ref : (TB, 1, C)      sum_acc/max_acc : (TB, C, lane_acc) f32 scratch
    k = pl.program_id(1)

    @pl.when(k == 0)
    def _init():
        sum_acc[...] = jnp.zeros_like(sum_acc)
        max_acc[...] = jnp.full_like(max_acc, -jnp.inf)

    tb = sum_acc.shape[0]
    C = sum_acc.shape[1]

    def accumulate(valid):
        # `valid` is a STATIC (Python int) number of valid lanes in this block.
        full = valid // lane_acc
        tail = valid - full * lane_acc
        for b in range(tb):
            for c0 in range(0, C, c_tile):
                cs = min(c_tile, C - c0)
                psum = jnp.zeros((cs, lane_acc), jnp.float32)
                pmax = jnp.full((cs, lane_acc), -jnp.inf, jnp.float32)

                if full > 0:
                    def body(j, carry):
                        s, m = carry
                        start = pl.multiple_of(j * lane_acc, lane_acc)
                        chunk = x_ref[b, pl.ds(c0, cs),
                                      pl.ds(start, lane_acc)].astype(jnp.float32)
                        return s + chunk, jnp.maximum(m, chunk)

                    psum, pmax = jax.lax.fori_loop(
                        0, full, body, (psum, pmax), unroll=min(full, 8))

                if tail:
                    # Final partial chunk of the ragged last block: lanes >= tail
                    # hold undefined VMEM data -> mask (0 for sum, -inf for max).
                    chunk = x_ref[b, pl.ds(c0, cs),
                                  pl.ds(full * lane_acc, lane_acc)].astype(jnp.float32)
                    lane_ids = jax.lax.broadcasted_iota(jnp.int32, chunk.shape, 1)
                    keep = lane_ids < tail
                    psum = psum + jnp.where(keep, chunk, 0.0)
                    pmax = jnp.maximum(pmax, jnp.where(keep, chunk, -jnp.inf))

                # Single scratch read-modify-write per (batch, C-subtile) per step.
                sum_acc[b, pl.ds(c0, cs), :] += psum
                max_acc[b, pl.ds(c0, cs), :] = jnp.maximum(
                    max_acc[b, pl.ds(c0, cs), :], pmax)

    if ragged:
        rem = hw - (n_hw - 1) * t_hw  # static valid length of the last block

        @pl.when(k < n_hw - 1)
        def _full_blocks():
            accumulate(t_hw)

        @pl.when(k == n_hw - 1)
        def _last_block():
            accumulate(rem)
    else:
        accumulate(t_hw)

    @pl.when(k == n_hw - 1)
    def _finalize():
        # Single cross-lane reduce + the 1/HW scale, done once per batch tile.
        avg = jnp.sum(sum_acc[...], axis=-1) * (1.0 / hw)          # (TB, C)
        mx = jnp.max(max_acc[...], axis=-1)                        # (TB, C)

        # Fused shared MLP: stack avg/max rows -> one dot pair on the MXU.
        pooled = jnp.concatenate([avg, mx], axis=0)                # (2*TB, C)
        w1 = w1_ref[...].astype(jnp.float32)
        w2 = w2_ref[...].astype(jnp.float32)
        h = jnp.maximum(
            jnp.dot(pooled, w1, preferred_element_type=jnp.float32), 0.0)
        o = jnp.dot(h, w2, preferred_element_type=jnp.float32)     # (2*TB, C)

        out = jax.nn.sigmoid(o[:tb] + o[tb:])                      # (TB, C)
        o_ref[...] = out[:, None, :].astype(o_ref.dtype)           # (TB, 1, C)


def channel_attention(x, w_fc1, w_fc2, *, block_hw=None, batch_tile=None):
    """x: (B, C, H, W); w_fc1: (Ch, C) [PyTorch conv (out,in)]; w_fc2: (C, Ch)."""
    B, C, H, W = x.shape
    Ch = w_fc1.shape[0]
    HW = H * W
    LANE = 128
    itemsize = jnp.dtype(x.dtype).itemsize

    x_flat = x.reshape(B, C, HW)
    w1 = w_fc1.T  # (C, Ch)
    w2 = w_fc2.T  # (Ch, C)

    # Spatial tile: aim for ~2 MiB per streamed x block (amortizes the ~0.35 us
    # per-step overhead, approaches the read roofline); always a multiple of 128
    # lanes (or the full extent when HW < 128). Double-buffered, this stays far
    # under the v7x 32 MiB scoped VMEM limit (and trivially under v5e/v6e's).
    if block_hw is None:
        tgt_elems = max(LANE, (2 * 1024 * 1024) // max(C * itemsize, 1))
        block_hw = max(LANE, (tgt_elems // LANE) * LANE)
    if HW <= LANE:
        t_hw = HW
    else:
        tgt = max(LANE, (block_hw // LANE) * LANE)
        t_hw = min(tgt, (HW // LANE) * LANE)
    n_hw = pl.cdiv(HW, t_hw)
    ragged = (HW % t_hw) != 0
    lane_acc = min(LANE, t_hw)
    c_tile = C if C <= 128 else 128

    # Batch tile: when HW fits in a single small tile, grow TB to amortize the
    # per-step overhead — but keep >= 2 programs on the "parallel" axis when
    # B >= 2 so both v7x TensorCores are used.
    if batch_tile is None:
        TB = 1
        if n_hw == 1:
            blk_bytes = C * t_hw * itemsize
            if blk_bytes < (1 << 20):
                for d in range(B, 0, -1):
                    if B % d != 0:
                        continue
                    if d * blk_bytes > (8 << 20):
                        continue
                    if B >= 2 and B // d < 2:
                        continue
                    TB = d
                    break
    else:
        TB = batch_tile
    if B % TB != 0:
        raise ValueError(f"batch_tile={TB} must divide B={B}")

    kernel = functools.partial(
        _channel_attention_kernel,
        hw=HW, t_hw=t_hw, n_hw=n_hw, lane_acc=lane_acc, ragged=ragged,
        c_tile=c_tile)

    out = pl.pallas_call(
        kernel,
        out_shape=jax.ShapeDtypeStruct((B, 1, C), x.dtype),
        grid_spec=pltpu.PrefetchScalarGridSpec(
            num_scalar_prefetch=0,
            grid=(B // TB, n_hw),
            in_specs=[
                pl.BlockSpec((TB, C, t_hw), lambda b, k: (b, 0, k)),
                pl.BlockSpec((C, Ch), lambda b, k: (0, 0)),
                pl.BlockSpec((Ch, C), lambda b, k: (0, 0)),
            ],
            out_specs=pl.BlockSpec((TB, 1, C), lambda b, k: (b, 0, 0)),
            scratch_shapes=[
                pltpu.VMEM((TB, C, lane_acc), jnp.float32),  # running sum
                pltpu.VMEM((TB, C, lane_acc), jnp.float32),  # running max
            ],
        ),
        compiler_params=pltpu.CompilerParams(
            dimension_semantics=("parallel", "arbitrary"),
            vmem_limit_bytes=32 * 1024 * 1024,
        ),
    )(x_flat, w1, w2)

    return out.reshape(B, C, 1, 1)


def channel_attention_ref(x, w_fc1, w_fc2):
    """Pure-JAX reference mirroring the PyTorch forward."""
    avg = jnp.mean(x, axis=(2, 3))                       # (B, C)
    mx = jnp.max(x, axis=(2, 3))                         # (B, C)

    def mlp(v):
        h = jnp.maximum(v @ w_fc1.T, 0.0)                # (B, Ch)
        return h @ w_fc2.T                               # (B, C)

    out = jax.nn.sigmoid(mlp(avg) + mlp(mx))
    return out.reshape(*out.shape, 1, 1)


if __name__ == "__main__":
    def run_case(B, C, H, W, ratio, block_hw=None, seed=0):
        Ch = max(1, C // ratio)
        key = jax.random.PRNGKey(seed)
        kx, k1, k2 = jax.random.split(key, 3)
        x = jax.random.normal(kx, (B, C, H, W), dtype=jnp.float32)
        # PyTorch conv weight shapes (out, in), 1x1 kernel squeezed.
        w_fc1 = jax.random.normal(k1, (Ch, C), dtype=jnp.float32) * 0.1
        w_fc2 = jax.random.normal(k2, (C, Ch), dtype=jnp.float32) * 0.1

        out = channel_attention(x, w_fc1, w_fc2, block_hw=block_hw)
        out = jax.block_until_ready(out)
        ref = channel_attention_ref(x, w_fc1, w_fc2)
        assert out.shape == (B, C, 1, 1)
        assert jnp.allclose(out, ref, atol=1e-5, rtol=1e-5), "mismatch vs reference"

    # Primary shape from the spec (B=2, C=64, ratio=16, 16x16 spatial): single
    # spatial tile, mask-free fast path.
    run_case(2, 64, 16, 16, 16, seed=0)
    # Multi-tile + ragged last spatial tile: HW=289, block_hw=128 -> 3 tiles with
    # a 33-lane masked edge; exercises accumulate / pl.when-finalize pipeline.
    run_case(2, 64, 17, 17, 16, block_hw=128, seed=1)
    # Small-HW shape that triggers batch tiling (TB=2) while keeping >=2
    # programs on the parallel axis.
    run_case(4, 32, 8, 8, 16, seed=2)

    print("KERNEL_OK")
</pallas_src>

<mosaic_0001>
module attributes {stable_mosaic.version = 11 : i64} {
  func.func @_channel_attention_kernel(%arg0: i32, %arg1: i32, %arg2: memref<1x64x256xf32, #tpu.memory_space<vmem>>, %arg3: memref<64x4xf32, #tpu.memory_space<vmem>>, %arg4: memref<4x64xf32, #tpu.memory_space<vmem>>, %arg5: memref<1x1x64xf32, #tpu.memory_space<vmem>>, %arg6: memref<1x64x128xf32, #tpu.memory_space<vmem>>, %arg7: memref<1x64x128xf32, #tpu.memory_space<vmem>>) attributes {dimension_semantics = [#tpu.dimension_semantics<parallel>, #tpu.dimension_semantics<arbitrary>], iteration_bounds = array<i64: 2, 1>, scalar_prefetch = 0 : i64, scratch_operands = 2 : i64, tpu.core_type = #tpu.core_type<tc>, window_params = [{transform_indices = @transform_0, window_bounds = array<i64: 1, 64, 256>}, {pipeline_mode = #tpu.pipeline_mode<synchronous>, transform_indices = @transform_1, window_bounds = array<i64: 64, 4>}, {pipeline_mode = #tpu.pipeline_mode<synchronous>, transform_indices = @transform_2, window_bounds = array<i64: 4, 64>}, {transform_indices = @transform_3, window_bounds = array<i64: 1, 1, 64>}]} {
    %c0_i32 = arith.constant 0 : i32
    %0 = arith.cmpi eq, %arg1, %c0_i32 : i32
    %1 = arith.extui %0 : i1 to i32
    %c0_i32_0 = arith.constant 0 : i32
    %2 = arith.cmpi ne, %1, %c0_i32_0 : i32
    scf.if %2 {
      %cst_21 = arith.constant 0.000000e+00 : f32
      %34 = vector.broadcast %cst_21 : f32 to vector<1x64x128xf32>
      %c0_22 = arith.constant 0 : index
      %c0_23 = arith.constant 0 : index
      %c0_24 = arith.constant 0 : index
      %35 = vector.load %arg6[%c0_22, %c0_23, %c0_24] : memref<1x64x128xf32, #tpu.memory_space<vmem>>, vector<1x64x128xf32>
      tpu.vector_store %arg6[%c0_22, %c0_23, %c0_24], %34 {strides = array<i32>} : memref<1x64x128xf32, #tpu.memory_space<vmem>>, vector<1x64x128xf32>,
      %cst_25 = arith.constant 0xFF800000 : f32
      %36 = vector.broadcast %cst_25 : f32 to vector<1x64x128xf32>
      %c0_26 = arith.constant 0 : index
      %c0_27 = arith.constant 0 : index
      %c0_28 = arith.constant 0 : index
      %37 = vector.load %arg7[%c0_26, %c0_27, %c0_28] : memref<1x64x128xf32, #tpu.memory_space<vmem>>, vector<1x64x128xf32>
      tpu.vector_store %arg7[%c0_26, %c0_27, %c0_28], %36 {strides = array<i32>} : memref<1x64x128xf32, #tpu.memory_space<vmem>>, vector<1x64x128xf32>,
    } else {
    }
    %cst = arith.constant 0.000000e+00 : f32
    %3 = vector.broadcast %cst : f32 to vector<64x128xf32>
    %cst_1 = arith.constant 0xFF800000 : f32
    %4 = vector.broadcast %cst_1 : f32 to vector<64x128xf32>
    %c0_i32_2 = arith.constant 0 : i32
    %c128_i32 = arith.constant 128 : i32
    %5 = arith.muli %c0_i32_2, %c128_i32 : i32
    %6 = tpu.assume_multiple %5, 128 : i32
    %c0 = arith.constant 0 : index
    %c0_3 = arith.constant 0 : index
    %7 = arith.index_cast %6 : i32 to index
    %8 = vector.load %arg2[%c0, %c0_3, %7] : memref<1x64x256xf32, #tpu.memory_space<vmem>>, vector<1x64x128xf32>
    %9 = vector.shape_cast %8 : vector<1x64x128xf32> to vector<64x128xf32>
    %10 = arith.addf %3, %9 : vector<64x128xf32>
    %11 = arith.maximumf %4, %9 : vector<64x128xf32>
    %c1_i32 = arith.constant 1 : i32
    %c128_i32_4 = arith.constant 128 : i32
    %12 = arith.muli %c1_i32, %c128_i32_4 : i32
    %13 = tpu.assume_multiple %12, 128 : i32
    %c0_5 = arith.constant 0 : index
    %c0_6 = arith.constant 0 : index
    %14 = arith.index_cast %13 : i32 to index
    %15 = vector.load %arg2[%c0_5, %c0_6, %14] : memref<1x64x256xf32, #tpu.memory_space<vmem>>, vector<1x64x128xf32>
    %16 = vector.shape_cast %15 : vector<1x64x128xf32> to vector<64x128xf32>
    %17 = arith.addf %10, %16 : vector<64x128xf32>
    %18 = arith.maximumf %11, %16 : vector<64x128xf32>
    %c2_i32 = arith.constant 2 : i32
    %c0_7 = arith.constant 0 : index
    %c0_8 = arith.constant 0 : index
    %c0_9 = arith.constant 0 : index
    %19 = vector.load %arg6[%c0_7, %c0_8, %c0_9] : memref<1x64x128xf32, #tpu.memory_space<vmem>>, vector<1x64x128xf32>
    %20 = vector.shape_cast %19 : vector<1x64x128xf32> to vector<64x128xf32>
    %21 = arith.addf %20, %17 : vector<64x128xf32>
    %c0_10 = arith.constant 0 : index
    %c0_11 = arith.constant 0 : index
    %c0_12 = arith.constant 0 : index
    %22 = vector.load %arg6[%c0_10, %c0_11, %c0_12] : memref<1x64x128xf32, #tpu.memory_space<vmem>>, vector<1x64x128xf32>
    %23 = vector.shape_cast %22 : vector<1x64x128xf32> to vector<64x128xf32>
    %24 = vector.shape_cast %21 : vector<64x128xf32> to vector<1x64x128xf32>
    tpu.vector_store %arg6[%c0_10, %c0_11, %c0_12], %24 {strides = array<i32>} : memref<1x64x128xf32, #tpu.memory_space<vmem>>, vector<1x64x128xf32>,
    %c0_13 = arith.constant 0 : index
    %c0_14 = arith.constant 0 : index
    %c0_15 = arith.constant 0 : index
    %25 = vector.load %arg7[%c0_13, %c0_14, %c0_15] : memref<1x64x128xf32, #tpu.memory_space<vmem>>, vector<1x64x128xf32>
    %26 = vector.shape_cast %25 : vector<1x64x128xf32> to vector<64x128xf32>
    %27 = arith.maximumf %26, %18 : vector<64x128xf32>
    %c0_16 = arith.constant 0 : index
    %c0_17 = arith.constant 0 : index
    %c0_18 = arith.constant 0 : index
    %28 = vector.load %arg7[%c0_16, %c0_17, %c0_18] : memref<1x64x128xf32, #tpu.memory_space<vmem>>, vector<1x64x128xf32>
    %29 = vector.shape_cast %28 : vector<1x64x128xf32> to vector<64x128xf32>
    %30 = vector.shape_cast %27 : vector<64x128xf32> to vector<1x64x128xf32>
    tpu.vector_store %arg7[%c0_16, %c0_17, %c0_18], %30 {strides = array<i32>} : memref<1x64x128xf32, #tpu.memory_space<vmem>>, vector<1x64x128xf32>,
    %c0_i32_19 = arith.constant 0 : i32
    %31 = arith.cmpi eq, %arg1, %c0_i32_19 : i32
    %32 = arith.extui %31 : i1 to i32
    %c0_i32_20 = arith.constant 0 : i32
    %33 = arith.cmpi ne, %32, %c0_i32_20 : i32
    scf.if %33 {
      %c0_21 = arith.constant 0 : index
      %c0_22 = arith.constant 0 : index
      %c0_23 = arith.constant 0 : index
      %34 = vector.load %arg6[%c0_21, %c0_22, %c0_23] : memref<1x64x128xf32, #tpu.memory_space<vmem>>, vector<1x64x128xf32>
      %cst_24 = arith.constant dense<0.000000e+00> : vector<1x64xf32>
      %35 = vector.multi_reduction <add>, %34, %cst_24 [2] : vector<1x64x128xf32> to vector<1x64xf32>
      %cst_25 = arith.constant 3.906250e-03 : f32
      %36 = vector.broadcast %cst_25 : f32 to vector<1x64xf32>
      %37 = arith.mulf %35, %36 : vector<1x64xf32>
      %c0_26 = arith.constant 0 : index
      %c0_27 = arith.constant 0 : index
      %c0_28 = arith.constant 0 : index
      %38 = vector.load %arg7[%c0_26, %c0_27, %c0_28] : memref<1x64x128xf32, #tpu.memory_space<vmem>>, vector<1x64x128xf32>
      %cst_29 = arith.constant dense<0xFF800000> : vector<1x64xf32>
      %39 = vector.multi_reduction <maximumf>, %38, %cst_29 [2] : vector<1x64x128xf32> to vector<1x64xf32>
      %40 = tpu.concatenate %37, %39 in 0 : vector<1x64xf32>, vector<1x64xf32> -> vector<2x64xf32>
      %c0_30 = arith.constant 0 : index
      %c0_31 = arith.constant 0 : index
      %41 = vector.load %arg3[%c0_30, %c0_31] : memref<64x4xf32, #tpu.memory_space<vmem>>, vector<64x4xf32>
      %c0_32 = arith.constant 0 : index
      %c0_33 = arith.constant 0 : index
      %42 = vector.load %arg4[%c0_32, %c0_33] : memref<4x64xf32, #tpu.memory_space<vmem>>, vector<4x64xf32>
      %cst_34 = arith.constant dense<0.000000e+00> : vector<2x4xf32>
      %43 = tpu.matmul %40, %41, %cst_34 {dimension_numbers = #tpu.dot_dimension_numbers<[1], [0], [0], [1], [0, 0, 1, 1], [], []>} : vector<2x64xf32>, vector<64x4xf32>, vector<2x4xf32> -> vector<2x4xf32>
      %cst_35 = arith.constant 0.000000e+00 : f32
      %44 = vector.broadcast %cst_35 : f32 to vector<2x4xf32>
      %45 = arith.maximumf %43, %44 : vector<2x4xf32>
      %cst_36 = arith.constant dense<0.000000e+00> : vector<2x64xf32>
      %46 = tpu.matmul %45, %42, %cst_36 {dimension_numbers = #tpu.dot_dimension_numbers<[1], [0], [0], [1], [0, 0, 1, 1], [], []>} : vector<2x4xf32>, vector<4x64xf32>, vector<2x64xf32> -> vector<2x64xf32>
      %47 = vector.extract_strided_slice %46 {offsets = [0, 0], sizes = [1, 64], strides = [1, 1]} : vector<2x64xf32> to vector<1x64xf32>
      %48 = vector.extract_strided_slice %46 {offsets = [1, 0], sizes = [1, 64], strides = [1, 1]} : vector<2x64xf32> to vector<1x64xf32>
      %49 = arith.addf %47, %48 : vector<1x64xf32>
      %50 = arith.negf %49 : vector<1x64xf32>
      %51 = math.exp %50 : vector<1x64xf32>
      %cst_37 = arith.constant 1.000000e+00 : f32
      %52 = vector.broadcast %cst_37 : f32 to vector<1x64xf32>
      %53 = arith.addf %52, %51 : vector<1x64xf32>
      %54 = arith.divf %52, %53 : vector<1x64xf32>
      %55 = vector.shape_cast %54 : vector<1x64xf32> to vector<1x1x64xf32>
      %c0_38 = arith.constant 0 : index
      %c0_39 = arith.constant 0 : index
      %c0_40 = arith.constant 0 : index
      %56 = vector.load %arg5[%c0_38, %c0_39, %c0_40] : memref<1x1x64xf32, #tpu.memory_space<vmem>>, vector<1x1x64xf32>
      tpu.vector_store %arg5[%c0_38, %c0_39, %c0_40], %55 {strides = array<i32>} : memref<1x1x64xf32, #tpu.memory_space<vmem>>, vector<1x1x64xf32>,
    } else {
    }
    return
  }
  func.func @transform_0(%arg0: i32, %arg1: i32) -> (i32, i32, i32) {
    %c0_i32 = arith.constant 0 : i32
    %c0_i32_0 = arith.constant 0 : i32
    return %arg0, %c0_i32, %arg1 : i32, i32, i32
  }
  func.func @transform_1(%arg0: i32, %arg1: i32) -> (i32, i32) {
    %c0_i32 = arith.constant 0 : i32
    %c0_i32_0 = arith.constant 0 : i32
    %c0_i32_1 = arith.constant 0 : i32
    return %c0_i32, %c0_i32_0 : i32, i32
  }
  func.func @transform_2(%arg0: i32, %arg1: i32) -> (i32, i32) {
    %c0_i32 = arith.constant 0 : i32
    %c0_i32_0 = arith.constant 0 : i32
    %c0_i32_1 = arith.constant 0 : i32
    return %c0_i32, %c0_i32_0 : i32, i32
  }
  func.func @transform_3(%arg0: i32, %arg1: i32) -> (i32, i32, i32) {
    %c0_i32 = arith.constant 0 : i32
    %c0_i32_0 = arith.constant 0 : i32
    %c0_i32_1 = arith.constant 0 : i32
    return %arg0, %c0_i32, %c0_i32_0 : i32, i32, i32
  }
}

</mosaic_0001>

<llo_original>
// kernel: tpu_custom_call.1
$region0: #{tpu_custom_call.1}
  #allocation0 [shape = 'u32[]', space=smem, size = 0x4, offset = 0x4, fixed_abs, tag = 'smem constant byte address 0x4 - core index']
  #allocation1 [shape = 'u32[144,128]{1,0:T(1,128)}', space=vmem, size = 0x12000, scoped, tag = 'internal scratch']
  #allocation2 [shape = 'f32[1,64,128]{2,1,0:T(8,128)}', space=vmem, size = 0x8000, scoped, tag = 'scratch operand']
  #allocation3 [shape = 'f32[1,64,128]{2,1,0:T(8,128)}', space=vmem, size = 0x8000, scoped, tag = 'scratch operand']
  %s0 = inlined_call_operand.hbm [shape: f32[2,64,256], index: 0, kind: input, shape index: {}]
  %s1 = inlined_call_operand.vmem [shape: f32[64,4], index: 1, kind: input, shape index: {}]
  %s2 = inlined_call_operand.vmem [shape: f32[4,64], index: 2, kind: input, shape index: {}]
  %s3 = inlined_call_operand.hbm [shape: f32[2,1,64], index: 3, kind: output, shape index: {}]
  %s4 = sld [smem:[#allocation0]]
  $region57: #{tpu_custom_call.1} parent=0
    _
  %s6 = ssub.s32 1, %s4
  %s7 = scalar_select 0, %s6, %s4
  $region1: #{tpu_custom_call.1} parent=0
    #allocation4 [shape = 'u8[131072]{0}', space=vmem, size = 0x20000, scoped, tag = 'input window, operand 0']
    #allocation5 [shape = 's32[2]{0}', space=sflag, size = 0x8, scoped, tag = 'scoped memory for tpu_custom_call.1']
    #allocation6 [shape = 's32[2]{0}', space=sflag, size = 0x8, scoped, tag = 'scoped memory for tpu_custom_call.1']
    #allocation7 [shape = 'u8[1024]{0}', space=vmem, size = 0x400, scoped, tag = 'output window, operand 0']
    %8 = vsyncpa [#allocation5], 0
    %s9 = scalar_lea.sflag [#allocation5], 1
    %10 = vsyncpa %s9, 0
    %11 = vsyncpa [#allocation6], 0
    %s12 = scalar_lea.sflag [#allocation6], 1
    %13 = vsyncpa %s12, 0
    loop: start=0, step=1, limit=4
    $region2: #{tpu_custom_call.1} parent=1 // loop_pre_header
      _
    $region3: #{tpu_custom_call.1} parent=1 // loop_header
      %s15 = sphi 0, %s19
      %p16 = scmp.ge.s32.totalorder %s15, 4
      %s22 = sphi 0, %s34
      %s23 = sphi 0, %s30
      %s24 = sphi 0, %s22
      %s25 = sphi 0, %s23
      %s26 = sphi 0, %s24
      %s27 = sphi 0, %s25
      %s39 = sphi 0, %s41
      %s42 = sphi 0, %s39
      %s43 = sphi 0, %s42
      %s59 = sphi 0, %s43
      %s63 = sphi 0, %s63
      %s65 = sphi 0, %s63
      %s66 = sphi 0, %s65
      %s80 = sphi 0, %s66
      %s84 = sphi 0, %s84
      %s86 = sphi 0, %s84
      %s87 = sphi 0, %s86
      %s101 = sphi 0, %s87
      %s107 = sphi 0, %s109
      %s110 = sphi 0, %s107
      %s111 = sphi 0, %s110
      %s127 = sphi 0, %s111
    $region4: #{tpu_custom_call.1} parent=1 // loop_header_branch
      %18 = sbr.rel (%p16) target = $region8
    $region5: #{tpu_custom_call.1} parent=1 // loop_body
      %s20 = ssub.s32 %s15, 1
      %s21 = ssub.s32 %s15, 2
      %s28 = sadd.s32 1, %s23
      %p29 = scmp.ge.s32.totalorder %s28, 1
      %s30 = scalar_select %p29, 0, %s28
      %s31 = sadd.s32 1, %s22
      %s32 = scalar_select %p29, %s31, %s22
      %p33 = scmp.ge.s32.totalorder %s32, 2
      %s34 = scalar_select %p33, 0, %s32
      %s35 = ssub.s32 %s22, %s34
      %s36 = ssub.s32 %s23, %s30
      %s37 = sor.u32 %s35, %s36
      %p38 = scmp.eq.s32.totalorder %s37, 0
      %s40 = sadd.s32 %s39, 1
      %s41 = scalar_select %p38, %s39, %s40
      %p44 = pneg %p38
      %p45 = scmp.eq.s32.totalorder %s15, 1
      %p46 = por %p44, %p45
      %p47 = scmp.ne.s32.totalorder %s39, %s42
      %p48 = scmp.eq.s32.totalorder %s15, 0
      %p49 = por %p47, %p48
      %p50 = scmp.ne.s32.totalorder %s39, %s42
      %p51 = scmp.eq.s32.totalorder %s20, 1
      %p52 = por %p50, %p51
      %p53 = scmp.ne.s32.totalorder %s42, %s43
      %p54 = scmp.eq.s32.totalorder %s20, 0
      %p55 = por %p53, %p54
      %p56 = scmp.ne.s32.totalorder %s42, %s43
      %p57 = scmp.eq.s32.totalorder %s21, 1
      %p58 = por %p56, %p57
      %p60 = scmp.ne.s32.totalorder %s43, %s59
      %p61 = scmp.eq.s32.totalorder %s21, 0
      %p62 = por %p60, %p61
      %s64 = sadd.s32 %s63, 1
      %p67 = scmp.eq.s32.totalorder %s15, 1
      %p68 = scmp.ne.s32.totalorder %s63, %s65
      %p69 = scmp.eq.s32.totalorder %s15, 0
      %p70 = por %p68, %p69
      %p71 = scmp.ne.s32.totalorder %s63, %s65
      %p72 = scmp.eq.s32.totalorder %s20, 1
      %p73 = por %p71, %p72
      %p74 = scmp.ne.s32.totalorder %s65, %s66
      %p75 = scmp.eq.s32.totalorder %s20, 0
      %p76 = por %p74, %p75
      %p77 = scmp.ne.s32.totalorder %s65, %s66
      %p78 = scmp.eq.s32.totalorder %s21, 1
      %p79 = por %p77, %p78
      %p81 = scmp.ne.s32.totalorder %s66, %s80
      %p82 = scmp.eq.s32.totalorder %s21, 0
      %p83 = por %p81, %p82
      %s85 = sadd.s32 %s84, 1
      %p88 = scmp.eq.s32.totalorder %s15, 1
      %p89 = scmp.ne.s32.totalorder %s84, %s86
      %p90 = scmp.eq.s32.totalorder %s15, 0
      %p91 = por %p89, %p90
      %p92 = scmp.ne.s32.totalorder %s84, %s86
      %p93 = scmp.eq.s32.totalorder %s20, 1
      %p94 = por %p92, %p93
      %p95 = scmp.ne.s32.totalorder %s86, %s87
      %p96 = scmp.eq.s32.totalorder %s20, 0
      %p97 = por %p95, %p96
      %p98 = scmp.ne.s32.totalorder %s86, %s87
      %p99 = scmp.eq.s32.totalorder %s21, 1
      %p100 = por %p98, %p99
      %p102 = scmp.ne.s32.totalorder %s87, %s101
      %p103 = scmp.eq.s32.totalorder %s21, 0
      %p104 = por %p102, %p103
      %s105 = ssub.s32 %s22, %s34
      %p106 = scmp.eq.s32.totalorder %s105, 0
      %s108 = sadd.s32 %s107, 1
      %s109 = scalar_select %p106, %s107, %s108
      %p112 = pneg %p106
      %p113 = scmp.eq.s32.totalorder %s15, 1
      %p114 = por %p112, %p113
      %p115 = scmp.ne.s32.totalorder %s107, %s110
      %p116 = scmp.eq.s32.totalorder %s15, 0
      %p117 = por %p115, %p116
      %p118 = scmp.ne.s32.totalorder %s107, %s110
      %p119 = scmp.eq.s32.totalorder %s20, 1
      %p120 = por %p118, %p119
      %p121 = scmp.ne.s32.totalorder %s110, %s111
      %p122 = scmp.eq.s32.totalorder %s20, 0
      %p123 = por %p121, %p122
      %p124 = scmp.ne.s32.totalorder %s110, %s111
      %p125 = scmp.eq.s32.totalorder %s21, 1
      %p126 = por %p124, %p125
      %p128 = scmp.ne.s32.totalorder %s111, %s127
      %p129 = scmp.eq.s32.totalorder %s21, 0
      %p130 = por %p128, %p129
      %p131 = scmp.le.s32.totalorder 1, %s15
      %p132 = scmp.lt.s32.totalorder %s15, 3
      %p133 = pnand %p131, %p132
      %p134 = pneg %p133
      // Predicated region
      $region9: #{tpu_custom_call.1} parent=5 // pred_check
        _
      $region10: #{tpu_custom_call.1} parent=5 // pred_check_branch
        %136 = sbr.rel (%p133) target = $region12
      $region11: #{tpu_custom_call.1} parent=5 // pred_region
        %s137 = ssub.s32 %s15, 1
        // Predicated region
        $region13: #{tpu_custom_call.1} parent=11 // pred_check
          %p138 = pneg %p76
        $region14: #{tpu_custom_call.1} parent=11 // pred_check_branch
          %140 = sbr.rel (%p138) target = $region16
        $region15: #{tpu_custom_call.1} parent=11 // pred_region
          _
        $region16: #{tpu_custom_call.1} parent=11 // pred_fallthru
          _
        // Predicated region
        $region17: #{tpu_custom_call.1} parent=11 // pred_check
          %p141 = pneg %p97
        $region18: #{tpu_custom_call.1} parent=11 // pred_check_branch
          %143 = sbr.rel (%p141) target = $region20
        $region19: #{tpu_custom_call.1} parent=11 // pred_region
          _
        $region20: #{tpu_custom_call.1} parent=11 // pred_fallthru
          _
      $region12: #{tpu_custom_call.1} parent=5 // pred_fallthru
        _
      %p144 = scmp.lt.s32.totalorder %s15, 2
      // Predicated region
      $region21: #{tpu_custom_call.1} parent=5 // pred_check
        %p145 = pneg %p144
      $region22: #{tpu_custom_call.1} parent=5 // pred_check_branch
        %147 = sbr.rel (%p145) target = $region24
      $region23: #{tpu_custom_call.1} parent=5 // pred_region
        // Predicated region
        $region25: #{tpu_custom_call.1} parent=23 // pred_check
          %p148 = pneg %p49
        $region26: #{tpu_custom_call.1} parent=23 // pred_check_branch
          %150 = sbr.rel (%p148) target = $region28
        $region27: #{tpu_custom_call.1} parent=23 // pred_region
          %s151 = sand.u32 %s39, 1
          %s152 = scalar_lea.sflag [#allocation5], %s151
          %s153 = sand.u32 %s39, 1
          %s154 = smul.addr %s153, 128
          %s155 = scalar_lea.vmem [#allocation4], %s154
          %s156 = smul.u32 2, %s23
          %s158 = ssub.s32 2048, 2048
          %159 = vsyncadd %s152, %s158
          %s160 = smul.addr %s22, 16
          %s161 = sadd.s32 %s156, %s160
          %s162 = smul.addr %s161, 128
          %s163 = scalar_lea.hbm %s0, %s162
          %s164 = sshll.u32 %s155, 4
          %s165 = int_to_ptr.vmem [resolvable:$true] %s164
          %170 = dma.hbm_to_vmem [thread:$0]  %s163, 2048, %s165, %s152, 256, 256, 16
        $region28: #{tpu_custom_call.1} parent=23 // pred_fallthru
          _
      $region24: #{tpu_custom_call.1} parent=5 // pred_fallthru
        _
      %p171 = scmp.le.s32.totalorder 1, %s15
      %p172 = scmp.lt.s32.totalorder %s15, 3
      %p173 = pnand %p171, %p172
      %p174 = pneg %p173
      // Predicated region
      $region29: #{tpu_custom_call.1} parent=5 // pred_check
        _
      $region30: #{tpu_custom_call.1} parent=5 // pred_check_branch
        %176 = sbr.rel (%p173) target = $region32
      $region31: #{tpu_custom_call.1} parent=5 // pred_region
        %s177 = ssub.s32 %s15, 1
        %s178 = sand.u32 %s42, 1
        %s179 = scalar_lea.sflag [#allocation5], %s178
        %s180 = sand.u32 %s42, 1
        %s181 = smul.addr %s180, 128
        %s182 = scalar_lea.vmem [#allocation4], %s181
        // Predicated region
        $region33: #{tpu_custom_call.1} parent=31 // pred_check
          %p183 = pneg %p55
        $region34: #{tpu_custom_call.1} parent=31 // pred_check_branch
          %185 = sbr.rel (%p183) target = $region36
        $region35: #{tpu_custom_call.1} parent=31 // pred_region
          %186 = dma.done %s179, 2048
        $region36: #{tpu_custom_call.1} parent=31 // pred_fallthru
          _
        %s187 = sand.u32 %s42, 1
        %s188 = scalar_lea.sflag [#allocation5], %s187
        %s189 = sand.u32 %s42, 1
        %s190 = smul.addr %s189, 128
        %s191 = scalar_lea.vmem [#allocation4], %s190
        %p192 = pneg %p55
        %p193 = pneg %p52
        %p194 = pneg %p76
        %p195 = pneg %p73
        %p196 = pneg %p97
        %p197 = pneg %p94
        %p198 = pneg %p123
        %p199 = pneg %p120
        %s200 = sand.u32 %s110, 1
        %s201 = scalar_lea.sflag [#allocation6], %s200
        %s202 = sand.u32 %s110, 1
        %s203 = scalar_lea.vmem [#allocation7], %s202
        %s204 = smul.u32 2, %s25
        %p205 = scmp.eq.s32.totalorder %s25, 0
        // Predicated region
        $region37: #{tpu_custom_call.1} parent=31 // pred_check
          %p206 = pneg %p205
        $region38: #{tpu_custom_call.1} parent=31 // pred_check_branch
          %208 = sbr.rel (%p206) target = $region40
        $region39: #{tpu_custom_call.1} parent=31 // pred_region
          %209 = vst [vmem:[#allocation2] sm:$0xff] 0.0
          %210 = vst [vmem:[#allocation2 + $0x8] sm:$0xff] 0.0
          %211 = vst [vmem:[#allocation2 + $0x10] sm:$0xff] 0.0
          %212 = vst [vmem:[#allocation2 + $0x18] sm:$0xff] 0.0
          %213 = vst [vmem:[#allocation2 + $0x20] sm:$0xff] 0.0
          %214 = vst [vmem:[#allocation2 + $0x28] sm:$0xff] 0.0
          %215 = vst [vmem:[#allocation2 + $0x30] sm:$0xff] 0.0
          %216 = vst [vmem:[#allocation2 + $0x38] sm:$0xff] 0.0
          %217 = vst [vmem:[#allocation3] sm:$0xff] -inf
          %218 = vst [vmem:[#allocation3 + $0x8] sm:$0xff] -inf
          %219 = vst [vmem:[#allocation3 + $0x10] sm:$0xff] -inf
          %220 = vst [vmem:[#allocation3 + $0x18] sm:$0xff] -inf
          %221 = vst [vmem:[#allocation3 + $0x20] sm:$0xff] -inf
          %222 = vst [vmem:[#allocation3 + $0x28] sm:$0xff] -inf
          %223 = vst [vmem:[#allocation3 + $0x30] sm:$0xff] -inf
          %224 = vst [vmem:[#allocation3 + $0x38] sm:$0xff] -inf
        $region40: #{tpu_custom_call.1} parent=31 // pred_fallthru
          _
        %v225 = vld [vmem:[%s182] sm:$0xff]
        %v226 = vld [vmem:[%s182 + $0x10] sm:$0xff]
        %v227 = vld [vmem:[%s182 + $0x20] sm:$0xff]
        %v228 = vld [vmem:[%s182 + $0x30] sm:$0xff]
        %v229 = vld [vmem:[%s182 + $0x40] sm:$0xff]
        %v230 = vld [vmem:[%s182 + $0x50] sm:$0xff]
        %v231 = vld [vmem:[%s182 + $0x60] sm:$0xff]
        %v232 = vld [vmem:[%s182 + $0x70] sm:$0xff]
        %v233 = vadd.f32 %v225, 0.0
        %v234 = vadd.f32 %v226, 0.0
        %v235 = vadd.f32 %v227, 0.0
        %v236 = vadd.f32 %v228, 0.0
        %v237 = vadd.f32 %v229, 0.0
        %v238 = vadd.f32 %v230, 0.0
        %v239 = vadd.f32 %v231, 0.0
        %v240 = vadd.f32 %v232, 0.0
        %s241 = scalar_lea.vmem %s182, 8 [#allocation4]
        %v242 = vld [vmem:[%s241] sm:$0xff]
        %v243 = vld [vmem:[%s241 + $0x10] sm:$0xff]
        %v244 = vld [vmem:[%s241 + $0x20] sm:$0xff]
        %v245 = vld [vmem:[%s241 + $0x30] sm:$0xff]
        %v246 = vld [vmem:[%s241 + $0x40] sm:$0xff]
        %v247 = vld [vmem:[%s241 + $0x50] sm:$0xff]
        %v248 = vld [vmem:[%s241 + $0x60] sm:$0xff]
        %v249 = vld [vmem:[%s241 + $0x70] sm:$0xff]
        %v250 = vadd.f32 %v233, %v242
        %v251 = vadd.f32 %v234, %v243
        %v252 = vadd.f32 %v235, %v244
        %v253 = vadd.f32 %v236, %v245
        %v254 = vadd.f32 %v237, %v246
        %v255 = vadd.f32 %v238, %v247
        %v256 = vadd.f32 %v239, %v248
        %v257 = vadd.f32 %v240, %v249
        %v258 = vmax.f32 %v225, %v242
        %v259 = vmax.f32 %v226, %v243
        %v260 = vmax.f32 %v227, %v244
        %v261 = vmax.f32 %v228, %v245
        %v262 = vmax.f32 %v229, %v246
        %v263 = vmax.f32 %v230, %v247
        %v264 = vmax.f32 %v231, %v248
        %v265 = vmax.f32 %v232, %v249
        %v266 = vld [vmem:[#allocation2] sm:$0xff]
        %v267 = vld [vmem:[#allocation2 + $0x8] sm:$0xff]
        %v268 = vld [vmem:[#allocation2 + $0x10] sm:$0xff]
        %v269 = vld [vmem:[#allocation2 + $0x18] sm:$0xff]
        %v270 = vld [vmem:[#allocation2 + $0x20] sm:$0xff]
        %v271 = vld [vmem:[#allocation2 + $0x28] sm:$0xff]
        %v272 = vld [vmem:[#allocation2 + $0x30] sm:$0xff]
        %v273 = vld [vmem:[#allocation2 + $0x38] sm:$0xff]
        %v274 = vadd.f32 %v266, %v250
        %v275 = vadd.f32 %v267, %v251
        %v276 = vadd.f32 %v268, %v252
        %v277 = vadd.f32 %v269, %v253
        %v278 = vadd.f32 %v270, %v254
        %v279 = vadd.f32 %v271, %v255
        %v280 = vadd.f32 %v272, %v256
        %v281 = vadd.f32 %v273, %v257
        %282 = vst [vmem:[#allocation2] sm:$0xff] %v274
        %283 = vst [vmem:[#allocation2 + $0x8] sm:$0xff] %v275
        %284 = vst [vmem:[#allocation2 + $0x10] sm:$0xff] %v276
        %285 = vst [vmem:[#allocation2 + $0x18] sm:$0xff] %v277
        %286 = vst [vmem:[#allocation2 + $0x20] sm:$0xff] %v278
        %287 = vst [vmem:[#allocation2 + $0x28] sm:$0xff] %v279
        %288 = vst [vmem:[#allocation2 + $0x30] sm:$0xff] %v280
        %289 = vst [vmem:[#allocation2 + $0x38] sm:$0xff] %v281
        %v290 = vld [vmem:[#allocation3] sm:$0xff]
        %v291 = vld [vmem:[#allocation3 + $0x8] sm:$0xff]
        %v292 = vld [vmem:[#allocation3 + $0x10] sm:$0xff]
        %v293 = vld [vmem:[#allocation3 + $0x18] sm:$0xff]
        %v294 = vld [vmem:[#allocation3 + $0x20] sm:$0xff]
        %v295 = vld [vmem:[#allocation3 + $0x28] sm:$0xff]
        %v296 = vld [vmem:[#allocation3 + $0x30] sm:$0xff]
        %v297 = vld [vmem:[#allocation3 + $0x38] sm:$0xff]
        %v298 = vmax.f32 %v290, %v258
        %v299 = vmax.f32 %v291, %v259
        %v300 = vmax.f32 %v292, %v260
        %v301 = vmax.f32 %v293, %v261
        %v302 = vmax.f32 %v294, %v262
        %v303 = vmax.f32 %v295, %v263
        %v304 = vmax.f32 %v296, %v264
        %v305 = vmax.f32 %v297, %v265
        %306 = vst [vmem:[#allocation3] sm:$0xff] %v298
        %307 = vst [vmem:[#allocation3 + $0x8] sm:$0xff] %v299
        %308 = vst [vmem:[#allocation3 + $0x10] sm:$0xff] %v300
        %309 = vst [vmem:[#allocation3 + $0x18] sm:$0xff] %v301
        %310 = vst [vmem:[#allocation3 + $0x20] sm:$0xff] %v302
        %311 = vst [vmem:[#allocation3 + $0x28] sm:$0xff] %v303
        %312 = vst [vmem:[#allocation3 + $0x30] sm:$0xff] %v304
        %313 = vst [vmem:[#allocation3 + $0x38] sm:$0xff] %v305
        // Predicated region
        $region41: #{tpu_custom_call.1} parent=31 // pred_check
          %p314 = pneg %p205
        $region42: #{tpu_custom_call.1} parent=31 // pred_check_branch
          %316 = sbr.rel (%p314) target = $region44
        $region43: #{tpu_custom_call.1} parent=31 // pred_region
          %v317 = vld [vmem:[#allocation2] sm:$0xff]
          %v318 = vld [vmem:[#allocation2 + $0x8] sm:$0xff]
          %v319 = vld [vmem:[#allocation2 + $0x10] sm:$0xff]
          %v320 = vld [vmem:[#allocation2 + $0x18] sm:$0xff]
          %v321 = vld [vmem:[#allocation2 + $0x20] sm:$0xff]
          %v322 = vld [vmem:[#allocation2 + $0x28] sm:$0xff]
          %v323 = vld [vmem:[#allocation2 + $0x30] sm:$0xff]
          %v324 = vld [vmem:[#allocation2 + $0x38] sm:$0xff]
          %325 = vadd.xlane.f32.xlu0 %v317
          %v326 = vpop.xlane.xlu0 %325
          %327 = vadd.xlane.f32.xlu0 %v318
          %v328 = vpop.xlane.xlu0 %327
          %329 = vadd.xlane.f32.xlu0 %v319
          %v330 = vpop.xlane.xlu0 %329
          %331 = vadd.xlane.f32.xlu0 %v320
          %v332 = vpop.xlane.xlu0 %331
          %333 = vadd.xlane.f32.xlu0 %v321
          %v334 = vpop.xlane.xlu0 %333
          %335 = vadd.xlane.f32.xlu0 %v322
          %v336 = vpop.xlane.xlu0 %335
          %337 = vadd.xlane.f32.xlu0 %v323
          %v338 = vpop.xlane.xlu0 %337
          %339 = vadd.xlane.f32.xlu0 %v324
          %v340 = vpop.xlane.xlu0 %339
          %v341 = vmul.f32 %v326, 0.00390625
          %v342 = vmul.f32 %v328, 0.00390625
          %v343 = vmul.f32 %v330, 0.00390625
          %v344 = vmul.f32 %v332, 0.00390625
          %v345 = vmul.f32 %v334, 0.00390625
          %v346 = vmul.f32 %v336, 0.00390625
          %v347 = vmul.f32 %v338, 0.00390625
          %v348 = vmul.f32 %v340, 0.00390625
          %v349 = vld [vmem:[#allocation3] sm:$0xff]
          %v350 = vld [vmem:[#allocation3 + $0x8] sm:$0xff]
          %v351 = vld [vmem:[#allocation3 + $0x10] sm:$0xff]
          %v352 = vld [vmem:[#allocation3 + $0x18] sm:$0xff]
          %v353 = vld [vmem:[#allocation3 + $0x20] sm:$0xff]
          %v354 = vld [vmem:[#allocation3 + $0x28] sm:$0xff]
          %v355 = vld [vmem:[#allocation3 + $0x30] sm:$0xff]
          %v356 = vld [vmem:[#allocation3 + $0x38] sm:$0xff]
          %357 = vmax.xlane.f32.xlu0 %v349
          %v358 = vpop.xlane.xlu0 %357
          %359 = vmax.xlane.f32.xlu0 %v350
          %v360 = vpop.xlane.xlu0 %359
          %361 = vmax.xlane.f32.xlu0 %v351
          %v362 = vpop.xlane.xlu0 %361
          %363 = vmax.xlane.f32.xlu0 %v352
          %v364 = vpop.xlane.xlu0 %363
          %365 = vmax.xlane.f32.xlu0 %v353
          %v366 = vpop.xlane.xlu0 %365
          %367 = vmax.xlane.f32.xlu0 %v354
          %v368 = vpop.xlane.xlu0 %367
          %369 = vmax.xlane.f32.xlu0 %v355
          %v370 = vpop.xlane.xlu0 %369
          %371 = vmax.xlane.f32.xlu0 %v356
          %v372 = vpop.xlane.xlu0 %371
          %v381 = vlaneseq
          %v382 = vand.u32 %v381, 127
          %v383 = vlaneseq
          %v384 = vshrl.u32 %v383, 7
          %v385 = vsub.s32 %v382, %v384
          %v386 = vrot.slane %v341, %v385
          %v387 = vadd.s32 %v382, 4294967288
          %v388 = vlaneseq
          %v389 = vshrl.u32 %v388, 7
          %v390 = vsub.s32 %v387, %v389
          %v391 = vrot.slane %v342, %v390
          %vm392 = vcmask 130112
          %v393 = vsel %vm392, %v391, %v386
          %v394 = vadd.s32 %v382, 4294967280
          %v395 = vlaneseq
          %v396 = vshrl.u32 %v395, 7
          %v397 = vsub.s32 %v394, %v396
          %v398 = vrot.slane %v343, %v397
          %vm399 = vcmask 195712
          %v400 = vsel %vm399, %v398, %v393
          %v401 = vadd.s32 %v382, 4294967272
          %v402 = vlaneseq
          %v403 = vshrl.u32 %v402, 7
          %v404 = vsub.s32 %v401, %v403
          %v405 = vrot.slane %v344, %v404
          %vm406 = vcmask 261312
          %v407 = vsel %vm406, %v405, %v400
          %v408 = vadd.s32 %v382, 4294967264
          %v409 = vlaneseq
          %v410 = vshrl.u32 %v409, 7
          %v411 = vsub.s32 %v408, %v410
          %v412 = vrot.slane %v345, %v411
          %vm413 = vcmask 326912
          %v414 = vsel %vm413, %v412, %v407
          %v415 = vadd.s32 %v382, 4294967256
          %v416 = vlaneseq
          %v417 = vshrl.u32 %v416, 7
          %v418 = vsub.s32 %v415, %v417
          %v419 = vrot.slane %v346, %v418
          %vm420 = vcmask 392512
          %v421 = vsel %vm420, %v419, %v414
          %v422 = vadd.s32 %v382, 4294967248
          %v423 = vlaneseq
          %v424 = vshrl.u32 %v423, 7
          %v425 = vsub.s32 %v422, %v424
          %v426 = vrot.slane %v347, %v425
          %vm427 = vcmask 458112
          %v428 = vsel %vm427, %v426, %v421
          %v429 = vadd.s32 %v382, 4294967240
          %v430 = vlaneseq
          %v431 = vshrl.u32 %v430, 7
          %v432 = vsub.s32 %v429, %v431
          %v433 = vrot.slane %v348, %v432
          %vm434 = vcmask 523712
          %v435 = vsel %vm434, %v433, %v428
          %v445 = vlaneseq
          %v446 = vshrl.u32 %v445, 7
          %v447 = vsub.s32 %v382, %v446
          %v448 = vrot.slane %v358, %v447
          %v449 = vlaneseq
          %v450 = vshrl.u32 %v449, 7
          %v451 = vsub.s32 %v387, %v450
          %v452 = vrot.slane %v360, %v451
          %v453 = vsel %vm392, %v452, %v448
          %v454 = vlaneseq
          %v455 = vshrl.u32 %v454, 7
          %v456 = vsub.s32 %v394, %v455
          %v457 = vrot.slane %v362, %v456
          %v458 = vsel %vm399, %v457, %v453
          %v459 = vlaneseq
          %v460 = vshrl.u32 %v459, 7
          %v461 = vsub.s32 %v401, %v460
          %v462 = vrot.slane %v364, %v461
          %v463 = vsel %vm406, %v462, %v458
          %v464 = vlaneseq
          %v465 = vshrl.u32 %v464, 7
          %v466 = vsub.s32 %v408, %v465
          %v467 = vrot.slane %v366, %v466
          %v468 = vsel %vm413, %v467, %v463
          %v469 = vlaneseq
          %v470 = vshrl.u32 %v469, 7
          %v471 = vsub.s32 %v415, %v470
          %v472 = vrot.slane %v368, %v471
          %v473 = vsel %vm420, %v472, %v468
          %v474 = vlaneseq
          %v475 = vshrl.u32 %v474, 7
          %v476 = vsub.s32 %v422, %v475
          %v477 = vrot.slane %v370, %v476
          %v478 = vsel %vm427, %v477, %v473
          %v479 = vlaneseq
          %v480 = vshrl.u32 %v479, 7
          %v481 = vsub.s32 %v429, %v480
          %v482 = vrot.slane %v372, %v481
          %v483 = vsel %vm434, %v482, %v478
          %vm485 = vcmask 1040384
          %v486 = vsel %vm485, %v435, %v483
          %v487 = vld [vmem:[%s1] sm:$0xff]
          %v488 = vld [vmem:[%s1 + $0x8] sm:$0xff]
          %v489 = vld [vmem:[%s1 + $0x10] sm:$0xff]
          %v490 = vld [vmem:[%s1 + $0x18] sm:$0xff]
          %v491 = vld [vmem:[%s1 + $0x20] sm:$0xff]
          %v492 = vld [vmem:[%s1 + $0x28] sm:$0xff]
          %v493 = vld [vmem:[%s1 + $0x30] sm:$0xff]
          %v494 = vld [vmem:[%s1 + $0x38] sm:$0xff]
          %v495 = vld [vmem:[%s2] sm:$0xf]
          %vm496 = vcmask 523264
          %v498 = vsel %vm496, %v486, 0
          %500 = vmatprep.subr.mxu0 0.0
          %501 = vmatpush1.msra.mxu0 %v487
          %502 = vmatprep.subr.mxu0 0.0
          %503 = vmatpush1.msra.mxu0 %v488
          %504 = vmatprep.subr.mxu0 0.0
          %505 = vmatpush1.msra.mxu0 %v489
          %506 = vmatprep.subr.mxu0 0.0
          %507 = vmatpush1.msra.mxu0 %v490
          %508 = vmatprep.subr.mxu0 0.0
          %509 = vmatpush1.msra.mxu0 %v491
          %510 = vmatprep.subr.mxu0 0.0
          %511 = vmatpush1.msra.mxu0 %v492
          %512 = vmatprep.subr.mxu0 0.0
          %513 = vmatpush1.msra.mxu0 %v493
          %514 = vmatprep.subr.mxu0 0.0
          %515 = vmatpush1.msra.mxu0 %v494
          %516 = vmatprep.subr.mxu0 0.0
          %517 = vmatpush1.msra.mxu0 0.0
          %518 = vmatprep.subr.mxu0 0.0
          %519 = vmatpush1.msra.mxu0 0.0
          %520 = vmatprep.subr.mxu0 0.0
          %521 = vmatpush1.msra.mxu0 0.0
          %522 = vmatprep.subr.mxu0 0.0
          %523 = vmatpush1.msra.mxu0 0.0
          %524 = vmatprep.subr.mxu0 0.0
          %525 = vmatpush1.msra.mxu0 0.0
          %526 = vmatprep.subr.mxu0 0.0
          %527 = vmatpush1.msra.mxu0 0.0
          %528 = vmatprep.subr.mxu0 0.0
          %529 = vmatpush1.msra.mxu0 0.0
          %530 = vmatprep.subr.mxu0 0.0
          %531 = vmatpush1.msra.mxu0 0.0
          %532 = vmatprep.subr.mxu0 0.0
          %533 = vmatpush1.msra.mxu0 0.0
          %534 = vmatprep.subr.mxu0 0.0
          %535 = vmatpush1.msra.mxu0 0.0
          %536 = vmatprep.subr.mxu0 0.0
          %537 = vmatpush1.msra.mxu0 0.0
          %538 = vmatprep.subr.mxu0 0.0
          %539 = vmatpush1.msra.mxu0 0.0
          %540 = vmatprep.subr.mxu0 0.0
          %541 = vmatpush1.msra.mxu0 0.0
          %542 = vmatprep.subr.mxu0 0.0
          %543 = vmatpush1.msra.mxu0 0.0
          %544 = vmatprep.subr.mxu0 0.0
          %545 = vmatpush1.msra.mxu0 0.0
          %546 = vmatprep.subr.mxu0 0.0
          %547 = vmatpush1.msra.mxu0 0.0
          %548 = vmatprep.subr.mxu0 0.0
          %549 = vmatpush1.msra.mxu0 0.0
          %550 = vmatprep.subr.mxu0 0.0
          %551 = vmatpush1.msra.mxu0 0.0
          %552 = vmatprep.subr.mxu0 0.0
          %553 = vmatpush1.msra.mxu0 0.0
          %554 = vmatprep.subr.mxu0 0.0
          %555 = vmatpush1.msra.mxu0 0.0
          %556 = vmatprep.subr.mxu0 0.0
          %557 = vmatpush1.msra.mxu0 0.0
          %558 = vmatprep.subr.mxu0 0.0
          %559 = vmatpush1.msra.mxu0 0.0
          %560 = vmatprep.subr.mxu0 0.0
          %561 = vmatpush1.msra.mxu0 0.0
          %562 = vmatprep.subr.mxu0 0.0
          %563 = vmatpush1.msra.mxu0 0.0
          %564 = vmatprep.mubr.f32.mxu0 0.0
          %565 = vmatmul.mubr.f32.gmra.mrb[0].mxu0 %v498
          %v566 = vpop.f32.mrb[0].mxu0
          %v567 = vadd.f32 0.0, %v566
          %v568 = vpop.f32.mrb[0].mxu0
          %569 = vdwg.mxu0
          %v570 = vmax.f32 %v567, 0.0
          %vm571 = vcmask 31744
          %v573 = vsel %vm571, %v570, 0
          %vm575 = vcmask 1043456
          %v577 = vsel %vm575, %v495, 0
          %579 = vmatprep.subr.mxu0 0.0
          %580 = vmatpush1.msra.mxu0 %v577
          %581 = vmatprep.subr.mxu0 0.0
          %582 = vmatpush1.msra.mxu0 0.0
          %583 = vmatprep.subr.mxu0 0.0
          %584 = vmatpush1.msra.mxu0 0.0
          %585 = vmatprep.subr.mxu0 0.0
          %586 = vmatpush1.msra.mxu0 0.0
          %587 = vmatprep.subr.mxu0 0.0
          %588 = vmatpush1.msra.mxu0 0.0
          %589 = vmatprep.subr.mxu0 0.0
          %590 = vmatpush1.msra.mxu0 0.0
          %591 = vmatprep.subr.mxu0 0.0
          %592 = vmatpush1.msra.mxu0 0.0
          %593 = vmatprep.subr.mxu0 0.0
          %594 = vmatpush1.msra.mxu0 0.0
          %595 = vmatprep.subr.mxu0 0.0
          %596 = vmatpush1.msra.mxu0 0.0
          %597 = vmatprep.subr.mxu0 0.0
          %598 = vmatpush1.msra.mxu0 0.0
          %599 = vmatprep.subr.mxu0 0.0
          %600 = vmatpush1.msra.mxu0 0.0
          %601 = vmatprep.subr.mxu0 0.0
          %602 = vmatpush1.msra.mxu0 0.0
          %603 = vmatprep.subr.mxu0 0.0
          %604 = vmatpush1.msra.mxu0 0.0
          %605 = vmatprep.subr.mxu0 0.0
          %606 = vmatpush1.msra.mxu0 0.0
          %607 = vmatprep.subr.mxu0 0.0
          %608 = vmatpush1.msra.mxu0 0.0
          %609 = vmatprep.subr.mxu0 0.0
          %610 = vmatpush1.msra.mxu0 0.0
          %611 = vmatprep.subr.mxu0 0.0
          %612 = vmatpush1.msra.mxu0 0.0
          %613 = vmatprep.subr.mxu0 0.0
          %614 = vmatpush1.msra.mxu0 0.0
          %615 = vmatprep.subr.mxu0 0.0
          %616 = vmatpush1.msra.mxu0 0.0
          %617 = vmatprep.subr.mxu0 0.0
          %618 = vmatpush1.msra.mxu0 0.0
          %619 = vmatprep.subr.mxu0 0.0
          %620 = vmatpush1.msra.mxu0 0.0
          %621 = vmatprep.subr.mxu0 0.0
          %622 = vmatpush1.msra.mxu0 0.0
          %623 = vmatprep.subr.mxu0 0.0
          %624 = vmatpush1.msra.mxu0 0.0
          %625 = vmatprep.subr.mxu0 0.0
          %626 = vmatpush1.msra.mxu0 0.0
          %627 = vmatprep.subr.mxu0 0.0
          %628 = vmatpush1.msra.mxu0 0.0
          %629 = vmatprep.subr.mxu0 0.0
          %630 = vmatpush1.msra.mxu0 0.0
          %631 = vmatprep.subr.mxu0 0.0
          %632 = vmatpush1.msra.mxu0 0.0
          %633 = vmatprep.subr.mxu0 0.0
          %634 = vmatpush1.msra.mxu0 0.0
          %635 = vmatprep.subr.mxu0 0.0
          %636 = vmatpush1.msra.mxu0 0.0
          %637 = vmatprep.subr.mxu0 0.0
          %638 = vmatpush1.msra.mxu0 0.0
          %639 = vmatprep.subr.mxu0 0.0
          %640 = vmatpush1.msra.mxu0 0.0
          %641 = vmatprep.subr.mxu0 0.0
          %642 = vmatpush1.msra.mxu0 0.0
          %643 = vmatprep.mubr.f32.mxu0 0.0
          %644 = vmatmul.mubr.f32.gmra.mrb[0].mxu0 %v573
          %v645 = vpop.f32.mrb[0].mxu0
          %v646 = vadd.f32 0.0, %v645
          %v647 = vpop.f32.mrb[0].mxu0
          %648 = vdwg.mxu0
          %v650 = vrot.slane %v646, 1
          %v652 = vadd.f32 %v646, %v650
          %v653 = vxor.u32 %v652, 2147483648
          %v654 = vmul.f32 %v653, 1.442695
          %v655 = vpow.pop %v654
          %v656 = vadd.f32 %v655, 1.0
          %v657 = vrcp.pop %v656
          %v658 = vmul.f32 1.0, %v657
          %vm659 = vcmask 516096
          %660 = vst.msk [vmem:[%s203] sm:$0x1] %vm659, %v658
        $region44: #{tpu_custom_call.1} parent=31 // pred_fallthru
          _
        %s661 = sand.u32 %s110, 1
        %s662 = scalar_lea.sflag [#allocation6], %s661
        %s663 = sand.u32 %s110, 1
        %s664 = scalar_lea.vmem [#allocation7], %s663
        // Predicated region
        $region45: #{tpu_custom_call.1} parent=31 // pred_check
          %p665 = pneg %p120
        $region46: #{tpu_custom_call.1} parent=31 // pred_check_branch
          %667 = sbr.rel (%p665) target = $region48
        $region47: #{tpu_custom_call.1} parent=31 // pred_region
          %s669 = ssub.s32 16, 16
          %670 = vsyncadd %s662, %s669
          %s671 = smul.addr %s24, 16
          %s672 = scalar_lea.hbm %s3, %s671
          %s674 = sshll.u32 %s664, 4
          %s675 = int_to_ptr.vmem [resolvable:$true] %s674
          %677 = dma.vmem_to_hbm [thread:$0]  %s675, 16, %s672, %s662
        $region48: #{tpu_custom_call.1} parent=31 // pred_fallthru
          _
      $region32: #{tpu_custom_call.1} parent=5 // pred_fallthru
        _
      %p678 = scmp.le.s32.totalorder 2, %s15
      // Predicated region
      $region49: #{tpu_custom_call.1} parent=5 // pred_check
        %p679 = pneg %p678
      $region50: #{tpu_custom_call.1} parent=5 // pred_check_branch
        %681 = sbr.rel (%p679) target = $region52
      $region51: #{tpu_custom_call.1} parent=5 // pred_region
        %s682 = ssub.s32 %s15, 2
        // Predicated region
        $region53: #{tpu_custom_call.1} parent=51 // pred_check
          %p683 = pneg %p126
        $region54: #{tpu_custom_call.1} parent=51 // pred_check_branch
          %685 = sbr.rel (%p683) target = $region56
        $region55: #{tpu_custom_call.1} parent=51 // pred_region
          %s686 = sand.u32 %s111, 1
          %s687 = scalar_lea.sflag [#allocation6], %s686
          %s688 = sand.u32 %s111, 1
          %s689 = scalar_lea.vmem [#allocation7], %s688
          %690 = dma.done %s687, 16
        $region56: #{tpu_custom_call.1} parent=51 // pred_fallthru
          _
      $region52: #{tpu_custom_call.1} parent=5 // pred_fallthru
        _
    $region6: #{tpu_custom_call.1} parent=1 // loop_footer
      %s19 = sadd.s32 1, %s15
    $region7: #{tpu_custom_call.1} parent=1 // loop_footer_branch
      %14 = sbr.rel target = $region3
    $region8: #{tpu_custom_call.1} parent=1 // loop_exit
      _
    %691 = vsyncpa [#allocation5], 1
    %s692 = scalar_lea.sflag [#allocation5], 1
    %693 = vsyncpa %s692, 1
    %694 = vsyncpa [#allocation6], 1
    %s695 = scalar_lea.sflag [#allocation6], 1
    %696 = vsyncpa %s695, 1

</llo_original>
